<compile_context>
chip_gen: v6e
topology: v6e:2x2x1
jax: 0.10.0
libtpu: 0.0.40
codegen_flags: <defaults>
</compile_context>

<pallas_src>
import jax
import jax.numpy as jnp
import numpy as np
from jax.experimental import pallas as pl
from jax.experimental.pallas import tpu as pltpu


def _interp_weights(out_size: int, in_size: int):
    """align_corners=True source indices / fractional weights (matches PyTorch)."""
    if out_size == 1:
        src = np.zeros((1,), dtype=np.float32)
    else:
        scale = np.float32(in_size - 1) / np.float32(out_size - 1)
        src = np.arange(out_size, dtype=np.float32) * scale
    i0 = np.clip(np.floor(src), 0, in_size - 1).astype(np.int32)
    i1 = np.minimum(i0 + 1, in_size - 1).astype(np.int32)
    frac = (src - i0.astype(np.float32)).astype(np.float32)
    return i0, i1, frac


def _interp_matrix(out_size: int, in_size: int) -> jnp.ndarray:
    """Dense (out, in) 1-D linear-interpolation matrix (align_corners=True)."""
    i0, i1, frac = _interp_weights(out_size, in_size)
    m = np.zeros((out_size, in_size), dtype=np.float32)
    rows = np.arange(out_size)
    np.add.at(m, (rows, i0), 1.0 - frac)
    np.add.at(m, (rows, i1), frac)
    return jnp.asarray(m)


def _resample_kernel(x_ref,      # (1, D, H*W)     input channel volume
                     md_ref,     # (Do, D)         depth-interp matrix
                     mhw_ref,    # (H*W, Ho*Wo)    combined H/W-interp matrix^T
                     o_ref):     # (1, Do, Ho*Wo)  output channel volume
    x = x_ref[0]                                                     # (D, H*W)
    t = jnp.dot(md_ref[...], x, preferred_element_type=jnp.float32)  # (Do, H*W)
    o = jnp.dot(t, mhw_ref[...], preferred_element_type=jnp.float32) # (Do, Ho*Wo)
    o_ref[0] = o.astype(o_ref.dtype)


def trilinear_resize(x, out_size):
    """x: (N, C, D, H, W) -> (N, C, Do, Ho, Wo), trilinear, align_corners=True."""
    N, C, D, H, W = x.shape
    Do, Ho, Wo = out_size

    Md = _interp_matrix(Do, D)                      # (Do, D)
    Mh = _interp_matrix(Ho, H)                      # (Ho, H)
    Mw = _interp_matrix(Wo, W)                      # (Wo, W)
    MhwT = jnp.kron(Mh, Mw).T                       # (H*W, Ho*Wo)

    x3 = x.reshape(N * C, D, H * W).astype(jnp.float32)

    out = pl.pallas_call(
        _resample_kernel,
        out_shape=jax.ShapeDtypeStruct((N * C, Do, Ho * Wo), jnp.float32),
        grid_spec=pltpu.PrefetchScalarGridSpec(
            num_scalar_prefetch=0,
            grid=(N * C,),
            in_specs=[
                pl.BlockSpec((1, D, H * W), lambda i: (i, 0, 0)),     # x channel
                pl.BlockSpec((Do, D), lambda i: (0, 0)),              # Md
                pl.BlockSpec((H * W, Ho * Wo), lambda i: (0, 0)),     # MhwT
            ],
            out_specs=pl.BlockSpec((1, Do, Ho * Wo), lambda i: (i, 0, 0)),
        ),
        compiler_params=pltpu.CompilerParams(
            dimension_semantics=("parallel",)),
    )(x3, Md, MhwT)

    return out.reshape(N, C, Do, Ho, Wo)


def output_forward(x, x_input):
    """Pallas equivalent of Output.forward(x, x_input)."""
    return trilinear_resize(
        x, (x_input.shape[2], x_input.shape[3], x_input.shape[4]))


if __name__ == "__main__":
    key = jax.random.PRNGKey(0)
    kx, kin = jax.random.split(key)
    # Low-res feature map and the "original" input whose spatial size we resample to.
    x = jax.random.normal(kx, (2, 4, 8, 8, 8), dtype=jnp.float32)
    x_input = jax.random.normal(kin, (2, 1, 16, 16, 16), dtype=jnp.float32)

    y = output_forward(x, x_input)
    y = jax.block_until_ready(y)
    assert y.shape == (2, 4, 16, 16, 16), y.shape

    # Pure-JAX reference of the same separable trilinear (align_corners=True) math.
    Md = _interp_matrix(16, 8)
    Mh = _interp_matrix(16, 8)
    Mw = _interp_matrix(16, 8)
    ref = jnp.einsum("ncdhw,Dd,Hh,Ww->ncDHW", x, Md, Mh, Mw)
    np.testing.assert_allclose(np.asarray(y), np.asarray(ref), rtol=1e-5, atol=1e-5)

    print("KERNEL_OK")
</pallas_src>

<mosaic_0001>
module attributes {stable_mosaic.version = 11 : i64} {
  func.func @_resample_kernel(%arg0: i32, %arg1: memref<1x8x64xf32, #tpu.memory_space<vmem>>, %arg2: memref<16x8xf32, #tpu.memory_space<vmem>>, %arg3: memref<64x256xf32, #tpu.memory_space<vmem>>, %arg4: memref<1x16x256xf32, #tpu.memory_space<vmem>>) attributes {dimension_semantics = [#tpu.dimension_semantics<parallel>], iteration_bounds = array<i64: 8>, scalar_prefetch = 0 : i64, scratch_operands = 0 : i64, tpu.core_type = #tpu.core_type<tc>, window_params = [{transform_indices = @transform_0, window_bounds = array<i64: 1, 8, 64>}, {pipeline_mode = #tpu.pipeline_mode<synchronous>, transform_indices = @transform_1, window_bounds = array<i64: 16, 8>}, {pipeline_mode = #tpu.pipeline_mode<synchronous>, transform_indices = @transform_2, window_bounds = array<i64: 64, 256>}, {transform_indices = @transform_3, window_bounds = array<i64: 1, 16, 256>}]} {
    %c0 = arith.constant 0 : index
    %c0_0 = arith.constant 0 : index
    %c0_1 = arith.constant 0 : index
    %0 = vector.load %arg1[%c0, %c0_0, %c0_1] : memref<1x8x64xf32, #tpu.memory_space<vmem>>, vector<1x8x64xf32>
    %1 = vector.shape_cast %0 : vector<1x8x64xf32> to vector<8x64xf32>
    %c0_2 = arith.constant 0 : index
    %c0_3 = arith.constant 0 : index
    %2 = vector.load %arg2[%c0_2, %c0_3] : memref<16x8xf32, #tpu.memory_space<vmem>>, vector<16x8xf32>
    %cst = arith.constant dense<0.000000e+00> : vector<16x64xf32>
    %3 = tpu.matmul %2, %1, %cst {dimension_numbers = #tpu.dot_dimension_numbers<[1], [0], [0], [1], [0, 0, 1, 1], [], []>} : vector<16x8xf32>, vector<8x64xf32>, vector<16x64xf32> -> vector<16x64xf32>
    %c0_4 = arith.constant 0 : index
    %c0_5 = arith.constant 0 : index
    %4 = vector.load %arg3[%c0_4, %c0_5] : memref<64x256xf32, #tpu.memory_space<vmem>>, vector<64x256xf32>
    %cst_6 = arith.constant dense<0.000000e+00> : vector<16x256xf32>
    %5 = tpu.matmul %3, %4, %cst_6 {dimension_numbers = #tpu.dot_dimension_numbers<[1], [0], [0], [1], [0, 0, 1, 1], [], []>} : vector<16x64xf32>, vector<64x256xf32>, vector<16x256xf32> -> vector<16x256xf32>
    %c0_7 = arith.constant 0 : index
    %c0_8 = arith.constant 0 : index
    %c0_9 = arith.constant 0 : index
    %6 = vector.load %arg4[%c0_7, %c0_8, %c0_9] : memref<1x16x256xf32, #tpu.memory_space<vmem>>, vector<1x16x256xf32>
    %7 = vector.shape_cast %6 : vector<1x16x256xf32> to vector<16x256xf32>
    %8 = vector.shape_cast %5 : vector<16x256xf32> to vector<1x16x256xf32>
    tpu.vector_store %arg4[%c0_7, %c0_8, %c0_9], %8 {strides = array<i32>} : memref<1x16x256xf32, #tpu.memory_space<vmem>>, vector<1x16x256xf32>,
    return
  }
  func.func @transform_0(%arg0: i32) -> (i32, i32, i32) {
    %c0_i32 = arith.constant 0 : i32
    %c0_i32_0 = arith.constant 0 : i32
    %c0_i32_1 = arith.constant 0 : i32
    return %arg0, %c0_i32, %c0_i32_0 : i32, i32, i32
  }
  func.func @transform_1(%arg0: i32) -> (i32, i32) {
    %c0_i32 = arith.constant 0 : i32
    %c0_i32_0 = arith.constant 0 : i32
    %c0_i32_1 = arith.constant 0 : i32
    return %c0_i32, %c0_i32_0 : i32, i32
  }
  func.func @transform_2(%arg0: i32) -> (i32, i32) {
    %c0_i32 = arith.constant 0 : i32
    %c0_i32_0 = arith.constant 0 : i32
    %c0_i32_1 = arith.constant 0 : i32
    return %c0_i32, %c0_i32_0 : i32, i32
  }
  func.func @transform_3(%arg0: i32) -> (i32, i32, i32) {
    %c0_i32 = arith.constant 0 : i32
    %c0_i32_0 = arith.constant 0 : i32
    %c0_i32_1 = arith.constant 0 : i32
    return %arg0, %c0_i32, %c0_i32_0 : i32, i32, i32
  }
}

</mosaic_0001>

<llo_original>
// kernel: tpu_custom_call.1
$region0: #{tpu_custom_call.1}
  #allocation0 [shape = 'u32[]', space=smem, size = 0x4, offset = 0x4, fixed_abs, tag = 'smem constant byte address 0x4 - core index']
  #allocation1 [shape = 'u32[144,128]{1,0:T(1,128)}', space=vmem, size = 0x12000, scoped, tag = 'internal scratch']
  %s0 = inlined_call_operand.hbm [shape: f32[8,8,64], index: 0, kind: input, shape index: {}]
  %s1 = inlined_call_operand.vmem [shape: f32[16,8], index: 1, kind: input, shape index: {}]
  %s2 = inlined_call_operand.hbm [shape: f32[64,256], index: 2, kind: input, shape index: {}]
  %s3 = inlined_call_operand.hbm [shape: f32[8,16,256], index: 3, kind: output, shape index: {}]
  %s4 = sld [smem:[#allocation0]]
  $region53: #{tpu_custom_call.1} parent=0
    _
  %s6 = ssub.s32 1, %s4
  %s7 = scalar_select 0, %s6, %s4
  $region1: #{tpu_custom_call.1} parent=0
    #allocation2 [shape = 'u8[8192]{0}', space=vmem, size = 0x2000, scoped, tag = 'input window, operand 0']
    #allocation3 [shape = 's32[2]{0}', space=sflag, size = 0x8, scoped, tag = 'scoped memory for tpu_custom_call.1']
    #allocation4 [shape = 's32[2]{0}', space=sflag, size = 0x8, scoped, tag = 'scoped memory for tpu_custom_call.1']
    #allocation5 [shape = 'u8[65536]{0}', space=vmem, size = 0x10000, scoped, tag = 'input window, operand 2, single buffered']
    #allocation6 [shape = 's32[1]{0}', space=sflag, size = 0x4, scoped, tag = 'scoped memory for tpu_custom_call.1']
    #allocation7 [shape = 'u8[32768]{0}', space=vmem, size = 0x8000, scoped, tag = 'output window, operand 0']
    %8 = vsyncpa [#allocation3], 0
    %s9 = scalar_lea.sflag [#allocation3], 1
    %10 = vsyncpa %s9, 0
    %11 = vsyncpa [#allocation6], 0
    %12 = vsyncpa [#allocation4], 0
    %s13 = scalar_lea.sflag [#allocation4], 1
    %14 = vsyncpa %s13, 0
    loop: start=0, step=1, limit=10
    $region2: #{tpu_custom_call.1} parent=1 // loop_pre_header
      _
    $region3: #{tpu_custom_call.1} parent=1 // loop_header
      %s16 = sphi 0, %s20
      %p17 = scmp.ge.s32.totalorder %s16, 10
      %s26 = sphi 0, %s28
      %s29 = sphi 0, %s26
      %s30 = sphi 0, %s29
      %s46 = sphi 0, %s30
      %s50 = sphi 0, %s50
      %s52 = sphi 0, %s50
      %s53 = sphi 0, %s52
      %s67 = sphi 0, %s53
      %s71 = sphi 0, %s71
      %s73 = sphi 0, %s71
      %s74 = sphi 0, %s73
      %s88 = sphi 0, %s74
      %s94 = sphi 0, %s96
      %s97 = sphi 0, %s94
      %s98 = sphi 0, %s97
      %s114 = sphi 0, %s98
    $region4: #{tpu_custom_call.1} parent=1 // loop_header_branch
      %19 = sbr.rel (%p17) target = $region8
    $region5: #{tpu_custom_call.1} parent=1 // loop_body
      %s21 = ssub.s32 %s16, 1
      %s22 = ssub.s32 %s16, 2
      %s23 = sadd.s32 %s16, 1
      %s24 = ssub.s32 %s16, %s23
      %p25 = scmp.eq.s32.totalorder %s24, 0
      %s27 = sadd.s32 %s26, 1
      %s28 = scalar_select %p25, %s26, %s27
      %p31 = pneg %p25
      %p32 = scmp.eq.s32.totalorder %s16, 7
      %p33 = por %p31, %p32
      %p34 = scmp.ne.s32.totalorder %s26, %s29
      %p35 = scmp.eq.s32.totalorder %s16, 0
      %p36 = por %p34, %p35
      %p37 = scmp.ne.s32.totalorder %s26, %s29
      %p38 = scmp.eq.s32.totalorder %s21, 7
      %p39 = por %p37, %p38
      %p40 = scmp.ne.s32.totalorder %s29, %s30
      %p41 = scmp.eq.s32.totalorder %s21, 0
      %p42 = por %p40, %p41
      %p43 = scmp.ne.s32.totalorder %s29, %s30
      %p44 = scmp.eq.s32.totalorder %s22, 7
      %p45 = por %p43, %p44
      %p47 = scmp.ne.s32.totalorder %s30, %s46
      %p48 = scmp.eq.s32.totalorder %s22, 0
      %p49 = por %p47, %p48
      %s51 = sadd.s32 %s50, 1
      %p54 = scmp.eq.s32.totalorder %s16, 7
      %p55 = scmp.ne.s32.totalorder %s50, %s52
      %p56 = scmp.eq.s32.totalorder %s16, 0
      %p57 = por %p55, %p56
      %p58 = scmp.ne.s32.totalorder %s50, %s52
      %p59 = scmp.eq.s32.totalorder %s21, 7
      %p60 = por %p58, %p59
      %p61 = scmp.ne.s32.totalorder %s52, %s53
      %p62 = scmp.eq.s32.totalorder %s21, 0
      %p63 = por %p61, %p62
      %p64 = scmp.ne.s32.totalorder %s52, %s53
      %p65 = scmp.eq.s32.totalorder %s22, 7
      %p66 = por %p64, %p65
      %p68 = scmp.ne.s32.totalorder %s53, %s67
      %p69 = scmp.eq.s32.totalorder %s22, 0
      %p70 = por %p68, %p69
      %s72 = sadd.s32 %s71, 1
      %p75 = scmp.eq.s32.totalorder %s16, 7
      %p76 = scmp.ne.s32.totalorder %s71, %s73
      %p77 = scmp.eq.s32.totalorder %s16, 0
      %p78 = por %p76, %p77
      %p79 = scmp.ne.s32.totalorder %s71, %s73
      %p80 = scmp.eq.s32.totalorder %s21, 7
      %p81 = por %p79, %p80
      %p82 = scmp.ne.s32.totalorder %s73, %s74
      %p83 = scmp.eq.s32.totalorder %s21, 0
      %p84 = por %p82, %p83
      %p85 = scmp.ne.s32.totalorder %s73, %s74
      %p86 = scmp.eq.s32.totalorder %s22, 7
      %p87 = por %p85, %p86
      %p89 = scmp.ne.s32.totalorder %s74, %s88
      %p90 = scmp.eq.s32.totalorder %s22, 0
      %p91 = por %p89, %p90
      %s92 = ssub.s32 %s16, %s23
      %p93 = scmp.eq.s32.totalorder %s92, 0
      %s95 = sadd.s32 %s94, 1
      %s96 = scalar_select %p93, %s94, %s95
      %p99 = pneg %p93
      %p100 = scmp.eq.s32.totalorder %s16, 7
      %p101 = por %p99, %p100
      %p102 = scmp.ne.s32.totalorder %s94, %s97
      %p103 = scmp.eq.s32.totalorder %s16, 0
      %p104 = por %p102, %p103
      %p105 = scmp.ne.s32.totalorder %s94, %s97
      %p106 = scmp.eq.s32.totalorder %s21, 7
      %p107 = por %p105, %p106
      %p108 = scmp.ne.s32.totalorder %s97, %s98
      %p109 = scmp.eq.s32.totalorder %s21, 0
      %p110 = por %p108, %p109
      %p111 = scmp.ne.s32.totalorder %s97, %s98
      %p112 = scmp.eq.s32.totalorder %s22, 7
      %p113 = por %p111, %p112
      %p115 = scmp.ne.s32.totalorder %s98, %s114
      %p116 = scmp.eq.s32.totalorder %s22, 0
      %p117 = por %p115, %p116
      %p118 = scmp.le.s32.totalorder 1, %s16
      %p119 = scmp.lt.s32.totalorder %s16, 9
      %p120 = pnand %p118, %p119
      %p121 = pneg %p120
      // Predicated region
      $region9: #{tpu_custom_call.1} parent=5 // pred_check
        _
      $region10: #{tpu_custom_call.1} parent=5 // pred_check_branch
        %123 = sbr.rel (%p120) target = $region12
      $region11: #{tpu_custom_call.1} parent=5 // pred_region
        %s124 = ssub.s32 %s16, 1
        // Predicated region
        $region13: #{tpu_custom_call.1} parent=11 // pred_check
          %p125 = pneg %p63
        $region14: #{tpu_custom_call.1} parent=11 // pred_check_branch
          %127 = sbr.rel (%p125) target = $region16
        $region15: #{tpu_custom_call.1} parent=11 // pred_region
          _
        $region16: #{tpu_custom_call.1} parent=11 // pred_fallthru
          _
        // Predicated region
        $region17: #{tpu_custom_call.1} parent=11 // pred_check
          %p128 = pneg %p84
        $region18: #{tpu_custom_call.1} parent=11 // pred_check_branch
          %130 = sbr.rel (%p128) target = $region20
        $region19: #{tpu_custom_call.1} parent=11 // pred_region
          %s132 = ssub.s32 2048, 2048
          %133 = vsyncadd [#allocation6], %s132
          %s134 = sshll.u32 [#allocation5], 4
          %s135 = int_to_ptr.vmem [resolvable:$true] %s134
          %140 = dma.hbm_to_vmem [thread:$0]  %s2, 2048, %s135, [#allocation6], 256, 256, 16
        $region20: #{tpu_custom_call.1} parent=11 // pred_fallthru
          _
      $region12: #{tpu_custom_call.1} parent=5 // pred_fallthru
        _
      %p141 = scmp.lt.s32.totalorder %s16, 8
      // Predicated region
      $region21: #{tpu_custom_call.1} parent=5 // pred_check
        %p142 = pneg %p141
      $region22: #{tpu_custom_call.1} parent=5 // pred_check_branch
        %144 = sbr.rel (%p142) target = $region24
      $region23: #{tpu_custom_call.1} parent=5 // pred_region
        // Predicated region
        $region25: #{tpu_custom_call.1} parent=23 // pred_check
          %p145 = pneg %p36
        $region26: #{tpu_custom_call.1} parent=23 // pred_check_branch
          %147 = sbr.rel (%p145) target = $region28
        $region27: #{tpu_custom_call.1} parent=23 // pred_region
          %s148 = sand.u32 %s26, 1
          %s149 = scalar_lea.sflag [#allocation3], %s148
          %s150 = sand.u32 %s26, 1
          %s151 = smul.addr %s150, 8
          %s152 = scalar_lea.vmem [#allocation2], %s151
          %s154 = ssub.s32 128, 128
          %155 = vsyncadd %s149, %s154
          %s156 = smul.addr %s16, 128
          %s157 = scalar_lea.hbm %s0, %s156
          %s159 = sshll.u32 %s152, 4
          %s160 = int_to_ptr.vmem [resolvable:$true] %s159
          %162 = dma.hbm_to_vmem [thread:$0]  %s157, 128, %s160, %s149
        $region28: #{tpu_custom_call.1} parent=23 // pred_fallthru
          _
      $region24: #{tpu_custom_call.1} parent=5 // pred_fallthru
        _
      %p163 = scmp.le.s32.totalorder 1, %s16
      %p164 = scmp.lt.s32.totalorder %s16, 9
      %p165 = pnand %p163, %p164
      %p166 = pneg %p165
      // Predicated region
      $region29: #{tpu_custom_call.1} parent=5 // pred_check
        _
      $region30: #{tpu_custom_call.1} parent=5 // pred_check_branch
        %168 = sbr.rel (%p165) target = $region32
      $region31: #{tpu_custom_call.1} parent=5 // pred_region
        %s169 = ssub.s32 %s16, 1
        %s170 = sand.u32 %s29, 1
        %s171 = scalar_lea.sflag [#allocation3], %s170
        %s172 = sand.u32 %s29, 1
        %s173 = smul.addr %s172, 8
        %s174 = scalar_lea.vmem [#allocation2], %s173
        // Predicated region
        $region33: #{tpu_custom_call.1} parent=31 // pred_check
          %p175 = pneg %p42
        $region34: #{tpu_custom_call.1} parent=31 // pred_check_branch
          %177 = sbr.rel (%p175) target = $region36
        $region35: #{tpu_custom_call.1} parent=31 // pred_region
          %178 = dma.done %s171, 128
        $region36: #{tpu_custom_call.1} parent=31 // pred_fallthru
          _
        // Predicated region
        $region37: #{tpu_custom_call.1} parent=31 // pred_check
          %p179 = pneg %p84
        $region38: #{tpu_custom_call.1} parent=31 // pred_check_branch
          %181 = sbr.rel (%p179) target = $region40
        $region39: #{tpu_custom_call.1} parent=31 // pred_region
          %182 = dma.done [#allocation6], 2048
        $region40: #{tpu_custom_call.1} parent=31 // pred_fallthru
          _
        %s183 = sand.u32 %s29, 1
        %s184 = scalar_lea.sflag [#allocation3], %s183
        %s185 = sand.u32 %s29, 1
        %s186 = smul.addr %s185, 8
        %s187 = scalar_lea.vmem [#allocation2], %s186
        %p188 = pneg %p42
        %p189 = pneg %p39
        %p190 = pneg %p63
        %p191 = pneg %p60
        %p192 = pneg %p84
        %p193 = pneg %p81
        %p194 = pneg %p110
        %p195 = pneg %p107
        %s196 = sand.u32 %s97, 1
        %s197 = scalar_lea.sflag [#allocation4], %s196
        %s198 = sand.u32 %s97, 1
        %s199 = smul.addr %s198, 32
        %s200 = scalar_lea.vmem [#allocation7], %s199
        %v201 = vld [vmem:[%s174] sm:$0xff]
        %v202 = vld [vmem:[%s1] sm:$0xff]
        %v203 = vld [vmem:[%s1 + $0x8] sm:$0xff]
        %vm204 = vcmask 64512
        %v206 = vsel %vm204, %v202, 0
        %v209 = vsel %vm204, %v203, 0
        %211 = vmatprep.subr.mxu0 0.0
        %212 = vmatpush1.msra.mxu0 0.0
        %213 = vmatprep.subr.mxu0 0.0
        %214 = vmatpush1.msra.mxu0 0.0
        %215 = vmatprep.subr.mxu0 0.0
        %216 = vmatpush1.msra.mxu0 0.0
        %217 = vmatprep.subr.mxu0 0.0
        %218 = vmatpush1.msra.mxu0 0.0
        %219 = vmatprep.subr.mxu0 0.0
        %220 = vmatpush1.msra.mxu0 0.0
        %221 = vmatprep.subr.mxu0 0.0
        %222 = vmatpush1.msra.mxu0 0.0
        %223 = vmatprep.subr.mxu0 0.0
        %224 = vmatpush1.msra.mxu0 0.0
        %225 = vmatprep.subr.mxu0 0.0
        %226 = vmatpush1.msra.mxu0 0.0
        %227 = vmatprep.subr.mxu0 0.0
        %228 = vmatpush1.msra.mxu0 0.0
        %229 = vmatprep.subr.mxu0 0.0
        %230 = vmatpush1.msra.mxu0 0.0
        %231 = vmatprep.subr.mxu0 0.0
        %232 = vmatpush1.msra.mxu0 0.0
        %233 = vmatprep.subr.mxu0 0.0
        %234 = vmatpush1.msra.mxu0 0.0
        %235 = vmatprep.subr.mxu0 0.0
        %236 = vmatpush1.msra.mxu0 0.0
        %237 = vmatprep.subr.mxu0 0.0
        %238 = vmatpush1.msra.mxu0 0.0
        %239 = vmatprep.subr.mxu0 0.0
        %240 = vmatpush1.msra.mxu0 0.0
        %241 = vmatprep.subr.mxu0 0.0
        %242 = vmatpush1.msra.mxu0 %v201
        %243 = vmatprep.subr.mxu0 0.0
        %244 = vmatpush2.msra.mxu0 0.0
        %245 = vmatprep.subr.mxu0 0.0
        %246 = vmatpush2.msra.mxu0 0.0
        %247 = vmatprep.subr.mxu0 0.0
        %248 = vmatpush2.msra.mxu0 0.0
        %249 = vmatprep.subr.mxu0 0.0
        %250 = vmatpush2.msra.mxu0 0.0
        %251 = vmatprep.subr.mxu0 0.0
        %252 = vmatpush2.msra.mxu0 0.0
        %253 = vmatprep.subr.mxu0 0.0
        %254 = vmatpush2.msra.mxu0 0.0
        %255 = vmatprep.subr.mxu0 0.0
        %256 = vmatpush2.msra.mxu0 0.0
        %257 = vmatprep.subr.mxu0 0.0
        %258 = vmatpush2.msra.mxu0 0.0
        %259 = vmatprep.subr.mxu0 0.0
        %260 = vmatpush2.msra.mxu0 0.0
        %261 = vmatprep.subr.mxu0 0.0
        %262 = vmatpush2.msra.mxu0 0.0
        %263 = vmatprep.subr.mxu0 0.0
        %264 = vmatpush2.msra.mxu0 0.0
        %265 = vmatprep.subr.mxu0 0.0
        %266 = vmatpush2.msra.mxu0 0.0
        %267 = vmatprep.subr.mxu0 0.0
        %268 = vmatpush2.msra.mxu0 0.0
        %269 = vmatprep.subr.mxu0 0.0
        %270 = vmatpush2.msra.mxu0 0.0
        %271 = vmatprep.subr.mxu0 0.0
        %272 = vmatpush2.msra.mxu0 0.0
        %273 = vmatprep.subr.mxu0 0.0
        %274 = vmatpush2.msra.mxu0 0.0
        %275 = vmatprep.mubr.f32.mxu0 0.0
        %276 = vmatmul.mubr.f32.gmra.mxu0 %v206
        %v277 = vpop.f32.mrf.mxu0
        %v278 = vadd.f32 0.0, %v277
        %v279 = vpop.f32.mrf.mxu0
        %280 = vmatprep.mubr.f32.mxu0 0.0
        %281 = vmatmul.mubr.f32.gmra.mxu0 %v209
        %v282 = vpop.f32.mrf.mxu0
        %v283 = vadd.f32 0.0, %v282
        %v284 = vpop.f32.mrf.mxu0
        %285 = vdwg.mxu0
        %v286 = vld [vmem:[#allocation5] sm:$0xff]
        %v287 = vld [vmem:[#allocation5 + $0x8] sm:$0xff]
        %v288 = vld [vmem:[#allocation5 + $0x10] sm:$0xff]
        %v289 = vld [vmem:[#allocation5 + $0x18] sm:$0xff]
        %v290 = vld [vmem:[#allocation5 + $0x20] sm:$0xff]
        %v291 = vld [vmem:[#allocation5 + $0x28] sm:$0xff]
        %v292 = vld [vmem:[#allocation5 + $0x30] sm:$0xff]
        %v293 = vld [vmem:[#allocation5 + $0x38] sm:$0xff]
        %v294 = vld [vmem:[#allocation5 + $0x40] sm:$0xff]
        %v295 = vld [vmem:[#allocation5 + $0x48] sm:$0xff]
        %v296 = vld [vmem:[#allocation5 + $0x50] sm:$0xff]
        %v297 = vld [vmem:[#allocation5 + $0x58] sm:$0xff]
        %v298 = vld [vmem:[#allocation5 + $0x60] sm:$0xff]
        %v299 = vld [vmem:[#allocation5 + $0x68] sm:$0xff]
        %v300 = vld [vmem:[#allocation5 + $0x70] sm:$0xff]
        %v301 = vld [vmem:[#allocation5 + $0x78] sm:$0xff]
        %vm302 = vcmask 523264
        %v304 = vsel %vm302, %v278, 0
        %v307 = vsel %vm302, %v283, 0
        %309 = vmatprep.subr.mxu0 0.0
        %310 = vmatpush1.msra.mxu0 0.0
        %311 = vmatprep.subr.mxu0 0.0
        %312 = vmatpush1.msra.mxu0 0.0
        %313 = vmatprep.subr.mxu0 0.0
        %314 = vmatpush1.msra.mxu0 0.0
        %315 = vmatprep.subr.mxu0 0.0
        %316 = vmatpush1.msra.mxu0 0.0
        %317 = vmatprep.subr.mxu0 0.0
        %318 = vmatpush1.msra.mxu0 0.0
        %319 = vmatprep.subr.mxu0 0.0
        %320 = vmatpush1.msra.mxu0 0.0
        %321 = vmatprep.subr.mxu0 0.0
        %322 = vmatpush1.msra.mxu0 0.0
        %323 = vmatprep.subr.mxu0 0.0
        %324 = vmatpush1.msra.mxu0 0.0
        %325 = vmatprep.subr.mxu0 %v301
        %326 = vmatpush1.msra.mxu0 %v300
        %327 = vmatprep.subr.mxu0 %v299
        %328 = vmatpush1.msra.mxu0 %v298
        %329 = vmatprep.subr.mxu0 %v297
        %330 = vmatpush1.msra.mxu0 %v296
        %331 = vmatprep.subr.mxu0 %v295
        %332 = vmatpush1.msra.mxu0 %v294
        %333 = vmatprep.subr.mxu0 %v293
        %334 = vmatpush1.msra.mxu0 %v292
        %335 = vmatprep.subr.mxu0 %v291
        %336 = vmatpush1.msra.mxu0 %v290
        %337 = vmatprep.subr.mxu0 %v289
        %338 = vmatpush1.msra.mxu0 %v288
        %339 = vmatprep.subr.mxu0 %v287
        %340 = vmatpush1.msra.mxu0 %v286
        %341 = vmatprep.subr.mxu0 0.0
        %342 = vmatpush2.msra.mxu0 0.0
        %343 = vmatprep.subr.mxu0 0.0
        %344 = vmatpush2.msra.mxu0 0.0
        %345 = vmatprep.subr.mxu0 0.0
        %346 = vmatpush2.msra.mxu0 0.0
        %347 = vmatprep.subr.mxu0 0.0
        %348 = vmatpush2.msra.mxu0 0.0
        %349 = vmatprep.subr.mxu0 0.0
        %350 = vmatpush2.msra.mxu0 0.0
        %351 = vmatprep.subr.mxu0 0.0
        %352 = vmatpush2.msra.mxu0 0.0
        %353 = vmatprep.subr.mxu0 0.0
        %354 = vmatpush2.msra.mxu0 0.0
        %355 = vmatprep.subr.mxu0 0.0
        %356 = vmatpush2.msra.mxu0 0.0
        %357 = vmatprep.subr.mxu0 0.0
        %358 = vmatpush2.msra.mxu0 0.0
        %359 = vmatprep.subr.mxu0 0.0
        %360 = vmatpush2.msra.mxu0 0.0
        %361 = vmatprep.subr.mxu0 0.0
        %362 = vmatpush2.msra.mxu0 0.0
        %363 = vmatprep.subr.mxu0 0.0
        %364 = vmatpush2.msra.mxu0 0.0
        %365 = vmatprep.subr.mxu0 0.0
        %366 = vmatpush2.msra.mxu0 0.0
        %367 = vmatprep.subr.mxu0 0.0
        %368 = vmatpush2.msra.mxu0 0.0
        %369 = vmatprep.subr.mxu0 0.0
        %370 = vmatpush2.msra.mxu0 0.0
        %371 = vmatprep.subr.mxu0 0.0
        %372 = vmatpush2.msra.mxu0 0.0
        %373 = vmatprep.mubr.f32.mxu0 0.0
        %374 = vmatmul.mubr.f32.gmra.mxu0 %v304
        %v375 = vpop.f32.mrf.mxu0
        %v376 = vadd.f32 0.0, %v375
        %v377 = vpop.f32.mrf.mxu0
        %v378 = vadd.f32 0.0, %v377
        %379 = vmatprep.mubr.f32.mxu0 0.0
        %380 = vmatmul.mubr.f32.gmra.mxu0 %v307
        %v381 = vpop.f32.mrf.mxu0
        %v382 = vadd.f32 0.0, %v381
        %v383 = vpop.f32.mrf.mxu0
        %v384 = vadd.f32 0.0, %v383
        %385 = vdwg.mxu0
        %386 = vst [vmem:[%s200] sm:$0xff] %v376
        %387 = vst [vmem:[%s200 + $0x8] sm:$0xff] %v378
        %388 = vst [vmem:[%s200 + $0x10] sm:$0xff] %v382
        %389 = vst [vmem:[%s200 + $0x18] sm:$0xff] %v384
        %s390 = sand.u32 %s97, 1
        %s391 = scalar_lea.sflag [#allocation4], %s390
        %s392 = sand.u32 %s97, 1
        %s393 = smul.addr %s392, 32
        %s394 = scalar_lea.vmem [#allocation7], %s393
        // Predicated region
        $region41: #{tpu_custom_call.1} parent=31 // pred_check
          %p395 = pneg %p107
        $region42: #{tpu_custom_call.1} parent=31 // pred_check_branch
          %397 = sbr.rel (%p395) target = $region44
        $region43: #{tpu_custom_call.1} parent=31 // pred_region
          %s399 = ssub.s32 512, 512
          %400 = vsyncadd %s391, %s399
          %s401 = smul.addr %s21, 4
          %s402 = smul.addr %s401, 128
          %s403 = scalar_lea.hbm %s3, %s402
          %s404 = sshll.u32 %s394, 4
          %s405 = int_to_ptr.vmem [resolvable:$true] %s404
          %410 = dma.vmem_to_hbm [thread:$0]  %s405, 512, %s403, %s391, 256, 256, 16
        $region44: #{tpu_custom_call.1} parent=31 // pred_fallthru
          _
      $region32: #{tpu_custom_call.1} parent=5 // pred_fallthru
        _
      %p411 = scmp.le.s32.totalorder 2, %s16
      // Predicated region
      $region45: #{tpu_custom_call.1} parent=5 // pred_check
        %p412 = pneg %p411
      $region46: #{tpu_custom_call.1} parent=5 // pred_check_branch
        %414 = sbr.rel (%p412) target = $region48
      $region47: #{tpu_custom_call.1} parent=5 // pred_region
        %s415 = ssub.s32 %s16, 2
        // Predicated region
        $region49: #{tpu_custom_call.1} parent=47 // pred_check
          %p416 = pneg %p113
        $region50: #{tpu_custom_call.1} parent=47 // pred_check_branch
          %418 = sbr.rel (%p416) target = $region52
        $region51: #{tpu_custom_call.1} parent=47 // pred_region
          %s419 = sand.u32 %s98, 1
          %s420 = scalar_lea.sflag [#allocation4], %s419
          %s421 = sand.u32 %s98, 1
          %s422 = smul.addr %s421, 32
          %s423 = scalar_lea.vmem [#allocation7], %s422
          %424 = dma.done %s420, 512
        $region52: #{tpu_custom_call.1} parent=47 // pred_fallthru
          _
      $region48: #{tpu_custom_call.1} parent=5 // pred_fallthru
        _
    $region6: #{tpu_custom_call.1} parent=1 // loop_footer
      %s20 = sadd.s32 1, %s16
    $region7: #{tpu_custom_call.1} parent=1 // loop_footer_branch
      %15 = sbr.rel target = $region3
    $region8: #{tpu_custom_call.1} parent=1 // loop_exit
      _
    %425 = vsyncpa [#allocation3], 1
    %s426 = scalar_lea.sflag [#allocation3], 1
    %427 = vsyncpa %s426, 1
    %428 = vsyncpa [#allocation6], 1
    %429 = vsyncpa [#allocation4], 1
    %s430 = scalar_lea.sflag [#allocation4], 1
    %431 = vsyncpa %s430, 1

</llo_original>
